<compile_context>
chip_gen: v7x
topology: tpu7x:2x2x1
jax: 0.10.0
libtpu: 0.0.40
codegen_flags: <defaults>
</compile_context>

<pallas_src>
import functools

import jax
import jax.numpy as jnp
from jax import lax
from jax.experimental import pallas as pl
from jax.experimental.pallas import tpu as pltpu


def _up_conv_kernel(x_ref, w_ref, b_ref, o_ref, *, w_halo, activation):
    """Fused upsample-x2 -> conv3x3 -> folded-BN -> activation.

    x_ref : (Cin_pad, S_pad)    original image with 1-px zero halo; batch and
                                spatial flattened on lanes, channels on sublanes.
    w_ref : (4*Cout, 9*Cin_pad) sub-pixel phase weights (BN folded).
    b_ref : (4*Cout, 1)         folded bias, replicated over the 4 phases.
    o_ref : (4*Cout, S_pad)     the 4 output phases stacked on sublanes.
    w_halo: lane stride of a +1 row shift (= W + 2).
    """
    x = x_ref[...]

    # im2col: the 9 (row, col) shifts stacked along the channel/sublane axis.
    # The circular wrap of the rolls only lands on halo / tail-pad destination
    # lanes, which the wrapper discards, so no masking is needed.
    cols = []
    for dr in (-1, 0, 1):
        for dc in (-1, 0, 1):
            off = dr * w_halo + dc
            cols.append(jnp.roll(x, -off, axis=1) if off else x)
    xcol = jnp.concatenate(cols, axis=0)                  # (9*Cin_pad, S_pad)

    # One MXU matmul computes all 4 sub-pixel phases of the upsampled conv.
    y = jnp.dot(w_ref[...], xcol, preferred_element_type=jnp.float32)
    y = y + b_ref[...]

    if activation == "silu":
        y = y * jax.nn.sigmoid(y)
    else:                                                 # 'relu'
        y = jnp.maximum(y, 0.0)
    o_ref[...] = y.astype(o_ref.dtype)


def _fold_bn(p, eps=1e-5):
    """Fold eval-mode BatchNorm2d into the conv weight/bias."""
    scale = p["gamma"] / jnp.sqrt(p["var"] + eps)
    w_f = p["w"] * scale[:, None, None, None]
    b_f = (p["b"] - p["mean"]) * scale + p["beta"]
    return w_f, b_f


def _subpixel_weights(w_f, b_f, cin_pad):
    """Fuse the nearest-2x upsample into the 3x3 conv.

    Returns the 4 per-phase 2x2 kernels packed as a (4*Cout, 9*Cin_pad)
    matrix matching the kernel's im2col layout:
      rows : phase-major (a, b), then Cout
      cols : shift-major (dr, dc) in {-1,0,+1}^2, then (padded) channel.
    """
    cout, cin = w_f.shape[:2]
    u0, u1, u2 = w_f[:, :, 0], w_f[:, :, 1], w_f[:, :, 2]   # (Cout, Cin, 3v)
    z = jnp.zeros_like(u0)
    # Combine kernel rows u per vertical phase a and source-row shift dr.
    rows = jnp.stack([
        jnp.stack([u0, u1 + u2, z], axis=2),     # a=0: dr=-1 <- u0 ; dr=0 <- u1+u2
        jnp.stack([z, u0 + u1, u2], axis=2),     # a=1: dr=0 <- u0+u1 ; dr=+1 <- u2
    ], axis=0)                                   # (2a, Cout, Cin, 3dr, 3v)
    v0, v1, v2 = rows[..., 0], rows[..., 1], rows[..., 2]
    z2 = jnp.zeros_like(v0)
    w_ph = jnp.stack([
        jnp.stack([v0, v1 + v2, z2], axis=-1),   # b=0: dc=-1 <- v0 ; dc=0 <- v1+v2
        jnp.stack([z2, v0 + v1, v2], axis=-1),   # b=1: dc=0 <- v0+v1 ; dc=+1 <- v2
    ], axis=1)                                   # (2a, 2b, Cout, Cin, 3dr, 3dc)
    w_all = w_ph.transpose(0, 1, 2, 4, 5, 3).reshape(4 * cout, 9, cin)
    w_all = jnp.pad(w_all, ((0, 0), (0, 0), (0, cin_pad - cin)))
    w_all = w_all.reshape(4 * cout, 9 * cin_pad)
    b_all = jnp.tile(b_f, 4)[:, None]            # (4*Cout, 1)
    return w_all, b_all


@functools.partial(jax.jit, static_argnames=("activation",))
def up_conv(x, params, activation="relu"):
    """Pallas forward for Upsample(x2) -> Conv2d(3x3, pad=1) -> BatchNorm2d -> act."""
    if activation not in ("relu", "silu"):
        # TODO(synk): utils.TilU(threshold) has no public definition; not implemented.
        raise NotImplementedError(f"activation {activation!r} not supported")

    B, cin, H, W = x.shape
    cout = params["w"].shape[0]
    cin_pad = ((cin + 7) // 8) * 8               # full sublane groups

    w_f, b_f = _fold_bn(params)
    w_all, b_all = _subpixel_weights(w_f, b_f, cin_pad)

    hp, wp = H + 2, W + 2                        # 1-px zero halo for the 3x3 window
    s = B * hp * wp
    s_pad = ((s + 127) // 128) * 128             # lane-dense (unmasked) loads/stores

    # Layout plumbing: channels -> sublanes, (batch, haloed rows, cols) -> lanes.
    x_halo = jnp.pad(x, ((0, 0), (0, 0), (1, 1), (1, 1)))
    x_flat = x_halo.transpose(1, 0, 2, 3).reshape(cin, s)
    x_flat = jnp.pad(x_flat, ((0, cin_pad - cin), (0, s_pad - s)))

    kernel = functools.partial(_up_conv_kernel, w_halo=wp, activation=activation)
    out = pl.pallas_call(
        kernel,
        out_shape=jax.ShapeDtypeStruct((4 * cout, s_pad), jnp.float32),
        grid_spec=pltpu.PrefetchScalarGridSpec(
            num_scalar_prefetch=0,
            # Single step: batch folded onto lanes, no per-batch grid overhead.
            grid=(1,),
            in_specs=[
                pl.BlockSpec((cin_pad, s_pad), lambda i: (0, 0)),
                pl.BlockSpec((4 * cout, 9 * cin_pad), lambda i: (0, 0)),
                pl.BlockSpec((4 * cout, 1), lambda i: (0, 0)),
            ],
            out_specs=pl.BlockSpec((4 * cout, s_pad), lambda i: (0, 0)),
        ),
        compiler_params=pltpu.CompilerParams(
            dimension_semantics=("arbitrary",)),
    )(x_flat, w_all, b_all)

    # Drop tail pad + halo, then pixel-shuffle the 4 phases back to (2H, 2W).
    y = out[:, :s].reshape(2, 2, cout, B, hp, wp)[:, :, :, :, 1:H + 1, 1:W + 1]
    y = y.transpose(3, 2, 4, 0, 5, 1).reshape(B, cout, 2 * H, 2 * W)
    return y


def init_params(key, cin, cout):
    k = jax.random.split(key, 4)
    return dict(
        w=0.1 * jax.random.normal(k[0], (cout, cin, 3, 3), jnp.float32),
        b=0.1 * jax.random.normal(k[1], (cout,), jnp.float32),
        gamma=1.0 + 0.1 * jax.random.normal(k[2], (cout,), jnp.float32),
        beta=0.1 * jax.random.normal(k[3], (cout,), jnp.float32),
        mean=jnp.zeros((cout,), jnp.float32),    # eval-mode running stats
        var=jnp.ones((cout,), jnp.float32),
    )


def reference(x, params, activation="relu"):
    """Plain-JAX/XLA reference: upsample -> conv -> folded BN -> activation."""
    w_f, b_f = _fold_bn(params)
    xu = jnp.repeat(jnp.repeat(x, 2, axis=2), 2, axis=3)     # nearest-neighbor x2
    y = lax.conv_general_dilated(
        xu, w_f, window_strides=(1, 1), padding=((1, 1), (1, 1)),
        dimension_numbers=("NCHW", "OIHW", "NCHW"),
        precision=lax.Precision.HIGHEST)
    y = y + b_f[None, :, None, None]
    if activation == "silu":
        return y * jax.nn.sigmoid(y)
    return jnp.maximum(y, 0.0)


if __name__ == "__main__":
    B, cin, cout, H, W = 2, 4, 8, 16, 16

    key = jax.random.PRNGKey(0)
    kx, kp = jax.random.split(key)
    x = jax.random.normal(kx, (B, cin, H, W), jnp.float32)
    params = init_params(kp, cin, cout)

    for act in ("relu", "silu"):
        y = up_conv(x, params, activation=act)
        jax.block_until_ready(y)
        y_ref = reference(x, params, activation=act)
        assert y.shape == (B, cout, 2 * H, 2 * W)
        assert jnp.allclose(y, y_ref, atol=1e-4, rtol=1e-4), (
            act, float(jnp.max(jnp.abs(y - y_ref))))

    print("KERNEL_OK")
</pallas_src>

<mosaic_0001>
module attributes {stable_mosaic.version = 11 : i64} {
  func.func @_up_conv_kernel(%arg0: i32, %arg1: memref<8x768xf32, #tpu.memory_space<vmem>>, %arg2: memref<32x72xf32, #tpu.memory_space<vmem>>, %arg3: memref<32x1xf32, #tpu.memory_space<vmem>>, %arg4: memref<32x768xf32, #tpu.memory_space<vmem>>) attributes {dimension_semantics = [#tpu.dimension_semantics<arbitrary>], iteration_bounds = array<i64: 1>, scalar_prefetch = 0 : i64, scratch_operands = 0 : i64, tpu.core_type = #tpu.core_type<tc>, window_params = [{pipeline_mode = #tpu.pipeline_mode<synchronous>, transform_indices = @transform_0, window_bounds = array<i64: 8, 768>}, {pipeline_mode = #tpu.pipeline_mode<synchronous>, transform_indices = @transform_1, window_bounds = array<i64: 32, 72>}, {pipeline_mode = #tpu.pipeline_mode<synchronous>, transform_indices = @transform_2, window_bounds = array<i64: 32, 1>}, {pipeline_mode = #tpu.pipeline_mode<synchronous>, transform_indices = @transform_3, window_bounds = array<i64: 32, 768>}]} {
    %c0 = arith.constant 0 : index
    %c0_0 = arith.constant 0 : index
    %0 = vector.load %arg1[%c0, %c0_0] : memref<8x768xf32, #tpu.memory_space<vmem>>, vector<8x768xf32>
    %1 = vector.extract_strided_slice %0 {offsets = [0, 749], sizes = [8, 19], strides = [1, 1]} : vector<8x768xf32> to vector<8x19xf32>
    %2 = vector.extract_strided_slice %0 {offsets = [0, 0], sizes = [8, 749], strides = [1, 1]} : vector<8x768xf32> to vector<8x749xf32>
    %3 = tpu.concatenate %1, %2 in 1 : vector<8x19xf32>, vector<8x749xf32> -> vector<8x768xf32>
    %4 = vector.extract_strided_slice %0 {offsets = [0, 750], sizes = [8, 18], strides = [1, 1]} : vector<8x768xf32> to vector<8x18xf32>
    %5 = vector.extract_strided_slice %0 {offsets = [0, 0], sizes = [8, 750], strides = [1, 1]} : vector<8x768xf32> to vector<8x750xf32>
    %6 = tpu.concatenate %4, %5 in 1 : vector<8x18xf32>, vector<8x750xf32> -> vector<8x768xf32>
    %7 = vector.extract_strided_slice %0 {offsets = [0, 751], sizes = [8, 17], strides = [1, 1]} : vector<8x768xf32> to vector<8x17xf32>
    %8 = vector.extract_strided_slice %0 {offsets = [0, 0], sizes = [8, 751], strides = [1, 1]} : vector<8x768xf32> to vector<8x751xf32>
    %9 = tpu.concatenate %7, %8 in 1 : vector<8x17xf32>, vector<8x751xf32> -> vector<8x768xf32>
    %10 = vector.extract_strided_slice %0 {offsets = [0, 767], sizes = [8, 1], strides = [1, 1]} : vector<8x768xf32> to vector<8x1xf32>
    %11 = vector.extract_strided_slice %0 {offsets = [0, 0], sizes = [8, 767], strides = [1, 1]} : vector<8x768xf32> to vector<8x767xf32>
    %12 = tpu.concatenate %10, %11 in 1 : vector<8x1xf32>, vector<8x767xf32> -> vector<8x768xf32>
    %13 = vector.extract_strided_slice %0 {offsets = [0, 1], sizes = [8, 767], strides = [1, 1]} : vector<8x768xf32> to vector<8x767xf32>
    %14 = vector.extract_strided_slice %0 {offsets = [0, 0], sizes = [8, 1], strides = [1, 1]} : vector<8x768xf32> to vector<8x1xf32>
    %15 = tpu.concatenate %13, %14 in 1 : vector<8x767xf32>, vector<8x1xf32> -> vector<8x768xf32>
    %16 = vector.extract_strided_slice %0 {offsets = [0, 17], sizes = [8, 751], strides = [1, 1]} : vector<8x768xf32> to vector<8x751xf32>
    %17 = vector.extract_strided_slice %0 {offsets = [0, 0], sizes = [8, 17], strides = [1, 1]} : vector<8x768xf32> to vector<8x17xf32>
    %18 = tpu.concatenate %16, %17 in 1 : vector<8x751xf32>, vector<8x17xf32> -> vector<8x768xf32>
    %19 = vector.extract_strided_slice %0 {offsets = [0, 18], sizes = [8, 750], strides = [1, 1]} : vector<8x768xf32> to vector<8x750xf32>
    %20 = vector.extract_strided_slice %0 {offsets = [0, 0], sizes = [8, 18], strides = [1, 1]} : vector<8x768xf32> to vector<8x18xf32>
    %21 = tpu.concatenate %19, %20 in 1 : vector<8x750xf32>, vector<8x18xf32> -> vector<8x768xf32>
    %22 = vector.extract_strided_slice %0 {offsets = [0, 19], sizes = [8, 749], strides = [1, 1]} : vector<8x768xf32> to vector<8x749xf32>
    %23 = vector.extract_strided_slice %0 {offsets = [0, 0], sizes = [8, 19], strides = [1, 1]} : vector<8x768xf32> to vector<8x19xf32>
    %24 = tpu.concatenate %22, %23 in 1 : vector<8x749xf32>, vector<8x19xf32> -> vector<8x768xf32>
    %25 = tpu.concatenate %3, %6, %9, %12, %0, %15, %18, %21, %24 in 0 : vector<8x768xf32>, vector<8x768xf32>, vector<8x768xf32>, vector<8x768xf32>, vector<8x768xf32>, vector<8x768xf32>, vector<8x768xf32>, vector<8x768xf32>, vector<8x768xf32> -> vector<72x768xf32>
    %c0_1 = arith.constant 0 : index
    %c0_2 = arith.constant 0 : index
    %26 = vector.load %arg2[%c0_1, %c0_2] : memref<32x72xf32, #tpu.memory_space<vmem>>, vector<32x72xf32>
    %cst = arith.constant dense<0.000000e+00> : vector<32x768xf32>
    %27 = tpu.matmul %26, %25, %cst {dimension_numbers = #tpu.dot_dimension_numbers<[1], [0], [0], [1], [0, 0, 1, 1], [], []>} : vector<32x72xf32>, vector<72x768xf32>, vector<32x768xf32> -> vector<32x768xf32>
    %c0_3 = arith.constant 0 : index
    %c0_4 = arith.constant 0 : index
    %28 = vector.load %arg3[%c0_3, %c0_4] : memref<32x1xf32, #tpu.memory_space<vmem>>, vector<32x1xf32>
    %29 = vector.broadcast %28 : vector<32x1xf32> to vector<32x768xf32>
    %30 = arith.addf %27, %29 : vector<32x768xf32>
    %cst_5 = arith.constant 0.000000e+00 : f32
    %31 = vector.broadcast %cst_5 : f32 to vector<32x768xf32>
    %32 = arith.maximumf %30, %31 : vector<32x768xf32>
    %c0_6 = arith.constant 0 : index
    %c0_7 = arith.constant 0 : index
    %33 = vector.load %arg4[%c0_6, %c0_7] : memref<32x768xf32, #tpu.memory_space<vmem>>, vector<32x768xf32>
    tpu.vector_store %arg4[%c0_6, %c0_7], %32 {strides = array<i32>} : memref<32x768xf32, #tpu.memory_space<vmem>>, vector<32x768xf32>,
    return
  }
  func.func @transform_0(%arg0: i32) -> (i32, i32) {
    %c0_i32 = arith.constant 0 : i32
    %c0_i32_0 = arith.constant 0 : i32
    %c0_i32_1 = arith.constant 0 : i32
    return %c0_i32, %c0_i32_0 : i32, i32
  }
  func.func @transform_1(%arg0: i32) -> (i32, i32) {
    %c0_i32 = arith.constant 0 : i32
    %c0_i32_0 = arith.constant 0 : i32
    %c0_i32_1 = arith.constant 0 : i32
    return %c0_i32, %c0_i32_0 : i32, i32
  }
  func.func @transform_2(%arg0: i32) -> (i32, i32) {
    %c0_i32 = arith.constant 0 : i32
    %c0_i32_0 = arith.constant 0 : i32
    %c0_i32_1 = arith.constant 0 : i32
    return %c0_i32, %c0_i32_0 : i32, i32
  }
  func.func @transform_3(%arg0: i32) -> (i32, i32) {
    %c0_i32 = arith.constant 0 : i32
    %c0_i32_0 = arith.constant 0 : i32
    %c0_i32_1 = arith.constant 0 : i32
    return %c0_i32, %c0_i32_0 : i32, i32
  }
}

</mosaic_0001>

<llo_original>
// kernel: tile.8
$region0: #{tile.8}
  #allocation0 [shape = 's32[1]{0}', space=sflag, size = 0x4, scoped, tag = 'scoped memory for tile.8']
  %s0 = inlined_call_operand.vmem [shape: f32[8], index: 0, kind: input, shape index: {}]
  %s1 = inlined_call_operand.vmem [shape: f32[4,8], index: 1, kind: output, shape index: {}]
  // Predicated region
  $region2: #{tile.8} parent=0 // pred_check
    _
  $region3: #{tile.8} parent=0 // pred_check_branch
    %3 = sbr.rel (0) target = $region5
  $region4: #{tile.8} parent=0 // pred_region
    _
  $region5: #{tile.8} parent=0 // pred_fallthru
    _
  %v4 = vld [vmem:[%s0] ss:$0 sm:$0xff]
  %5 = vst [vmem:[%s1] sm:$0xf] %v4

// kernel: tile.0
$region0: #{tile.0}
  %s0 = inlined_call_operand.vmem [shape: f32[4,8], index: 0, kind: input, shape index: {}]
  %s1 = inlined_call_operand.vmem [shape: f32[32,1], index: 1, kind: output, shape index: {}]
  $region1: #{tile.0} parent=0
    #allocation0 [shape = 'u8[4096]{0}', space=vmem, size = 0x1000, scoped, tag = 'scoped mem for input reshape']
    %s3 = sshllo.u32 0, 4
    %v4 = vld [vmem:[%s0] sm:%s3]
    %5 = vst [vmem:[#allocation0] sm:%s3] %v4
    %v6 = vld [vmem:[#allocation0] sm:$0xf]
    %vm7 = vcmask 7168
    %8 = vst.msk [vmem:[%s1] ss:$8 sm:$0xf] %vm7, %v6
    %v9 = vld [vmem:[#allocation0] sm:$0xf]
    %10 = vrot.lane.b32.xlu0 %v9, 127
    %v11 = vpop.permute.xlu0 %10
    %vm12 = vcmask 7168
    %s13 = scalar_lea.vmem %s1, 1
    %14 = vst.msk [vmem:[%s13] ss:$8 sm:$0xf] %vm12, %v11
    %v15 = vld [vmem:[#allocation0] sm:$0xf]
    %16 = vrot.lane.b32.xlu0 %v15, 126
    %v17 = vpop.permute.xlu0 %16
    %vm18 = vcmask 7168
    %s19 = scalar_lea.vmem %s1, 2
    %20 = vst.msk [vmem:[%s19] ss:$8 sm:$0xf] %vm18, %v17
    %v21 = vld [vmem:[#allocation0] sm:$0xf]
    %22 = vrot.lane.b32.xlu0 %v21, 125
    %v23 = vpop.permute.xlu0 %22
    %vm24 = vcmask 7168
    %s25 = scalar_lea.vmem %s1, 3
    %26 = vst.msk [vmem:[%s25] ss:$8 sm:$0xf] %vm24, %v23
    %v27 = vld [vmem:[#allocation0] sm:$0xf]
    %28 = vrot.lane.b32.xlu0 %v27, 124
    %v29 = vpop.permute.xlu0 %28
    %vm30 = vcmask 7168
    %s31 = scalar_lea.vmem %s1, 4
    %32 = vst.msk [vmem:[%s31] ss:$8 sm:$0xf] %vm30, %v29
    %v33 = vld [vmem:[#allocation0] sm:$0xf]
    %34 = vrot.lane.b32.xlu0 %v33, 123
    %v35 = vpop.permute.xlu0 %34
    %vm36 = vcmask 7168
    %s37 = scalar_lea.vmem %s1, 5
    %38 = vst.msk [vmem:[%s37] ss:$8 sm:$0xf] %vm36, %v35
    %v39 = vld [vmem:[#allocation0] sm:$0xf]
    %40 = vrot.lane.b32.xlu0 %v39, 122
    %v41 = vpop.permute.xlu0 %40
    %vm42 = vcmask 7168
    %s43 = scalar_lea.vmem %s1, 6
    %44 = vst.msk [vmem:[%s43] ss:$8 sm:$0xf] %vm42, %v41
    %v45 = vld [vmem:[#allocation0] sm:$0xf]
    %46 = vrot.lane.b32.xlu0 %v45, 121
    %v47 = vpop.permute.xlu0 %46
    %vm48 = vcmask 7168
    %s49 = scalar_lea.vmem %s1, 7
    %50 = vst.msk [vmem:[%s49] ss:$8 sm:$0xf] %vm48, %v47

// kernel: up_conv.1
$region0: #{up_conv.1}
  #allocation0 [shape = 'u32[]', space=smem, size = 0x4, offset = 0x4, fixed_abs, tag = 'smem constant byte address 0x4 - core index']
  #allocation1 [shape = 'u32[144,128]{1,0:T(1,128)}', space=vmem, size = 0x12000, scoped, tag = 'internal scratch']
  %s0 = inlined_call_operand.vmem [shape: f32[8,768], index: 0, kind: input, shape index: {}]
  %s1 = inlined_call_operand.vmem [shape: f32[32,72], index: 1, kind: input, shape index: {}]
  %s2 = inlined_call_operand.vmem [shape: f32[32,1], index: 2, kind: input, shape index: {}]
  %s3 = inlined_call_operand.vmem [shape: f32[32,768], index: 3, kind: output, shape index: {}]
  %s4 = sld [smem:[#allocation0]]
  $region22: #{up_conv.1} parent=0
    _
  %s6 = ssub.s32 1, %s4
  %s7 = scalar_select 0, %s6, %s4
  // Predicated region
  $region2: #{up_conv.1} parent=0 // pred_check
    _
  $region3: #{up_conv.1} parent=0 // pred_check_branch
    %9 = sbr.rel (0) target = $region5
  $region4: #{up_conv.1} parent=0 // pred_region
    _
  $region5: #{up_conv.1} parent=0 // pred_fallthru
    _
  // Predicated region
  $region6: #{up_conv.1} parent=0 // pred_check
    _
  $region7: #{up_conv.1} parent=0 // pred_check_branch
    %11 = sbr.rel (0) target = $region9
  $region8: #{up_conv.1} parent=0 // pred_region
    _
  $region9: #{up_conv.1} parent=0 // pred_fallthru
    _
  // Predicated region
  $region10: #{up_conv.1} parent=0 // pred_check
    _
  $region11: #{up_conv.1} parent=0 // pred_check_branch
    %13 = sbr.rel (0) target = $region13
  $region12: #{up_conv.1} parent=0 // pred_region
    _
  $region13: #{up_conv.1} parent=0 // pred_fallthru
    _
  %v14 = vld [vmem:[%s0] sm:$0xff]
  %v15 = vld [vmem:[%s0 + $0x8] sm:$0xff]
  %v16 = vld [vmem:[%s0 + $0x10] sm:$0xff]
  %v17 = vld [vmem:[%s0 + $0x18] sm:$0xff]
  %v18 = vld [vmem:[%s0 + $0x20] sm:$0xff]
  %v19 = vld [vmem:[%s0 + $0x28] sm:$0xff]
  %21 = vrot.lane.b32.xlu0 %v19, 19
  %v22 = vpop.permute.xlu0 %21
  %29 = vrot.lane.b32.xlu0 %v14, 19
  %v30 = vpop.permute.xlu0 %29
  %31 = vrot.lane.b32.xlu0 %v15, 19
  %v32 = vpop.permute.xlu0 %31
  %33 = vrot.lane.b32.xlu0 %v16, 19
  %v34 = vpop.permute.xlu0 %33
  %35 = vrot.lane.b32.xlu0 %v17, 19
  %v36 = vpop.permute.xlu0 %35
  %37 = vrot.lane.b32.xlu0 %v18, 19
  %v38 = vpop.permute.xlu0 %37
  %vm39 = vcmask 154624
  %v40 = vsel %vm39, %v30, %v32
  %v41 = vsel %vm39, %v32, %v34
  %v42 = vsel %vm39, %v34, %v36
  %v43 = vsel %vm39, %v36, %v38
  %v44 = vsel %vm39, %v38, %v22
  %v51 = vsel %vm39, %v22, %v30
  %52 = vrot.lane.b32.xlu0 %v19, 18
  %v53 = vpop.permute.xlu0 %52
  %55 = vrot.lane.b32.xlu0 %v14, 18
  %v56 = vpop.permute.xlu0 %55
  %57 = vrot.lane.b32.xlu0 %v15, 18
  %v58 = vpop.permute.xlu0 %57
  %59 = vrot.lane.b32.xlu0 %v16, 18
  %v60 = vpop.permute.xlu0 %59
  %61 = vrot.lane.b32.xlu0 %v17, 18
  %v62 = vpop.permute.xlu0 %61
  %63 = vrot.lane.b32.xlu0 %v18, 18
  %v64 = vpop.permute.xlu0 %63
  %vm65 = vcmask 146432
  %v66 = vsel %vm65, %v56, %v58
  %v67 = vsel %vm65, %v58, %v60
  %v68 = vsel %vm65, %v60, %v62
  %v69 = vsel %vm65, %v62, %v64
  %v70 = vsel %vm65, %v64, %v53
  %v77 = vsel %vm65, %v53, %v56
  %78 = vrot.lane.b32.xlu0 %v19, 17
  %v79 = vpop.permute.xlu0 %78
  %81 = vrot.lane.b32.xlu0 %v14, 17
  %v82 = vpop.permute.xlu0 %81
  %83 = vrot.lane.b32.xlu0 %v15, 17
  %v84 = vpop.permute.xlu0 %83
  %85 = vrot.lane.b32.xlu0 %v16, 17
  %v86 = vpop.permute.xlu0 %85
  %87 = vrot.lane.b32.xlu0 %v17, 17
  %v88 = vpop.permute.xlu0 %87
  %89 = vrot.lane.b32.xlu0 %v18, 17
  %v90 = vpop.permute.xlu0 %89
  %vm91 = vcmask 138240
  %v92 = vsel %vm91, %v82, %v84
  %v93 = vsel %vm91, %v84, %v86
  %v94 = vsel %vm91, %v86, %v88
  %v95 = vsel %vm91, %v88, %v90
  %v96 = vsel %vm91, %v90, %v79
  %v103 = vsel %vm91, %v79, %v82
  %104 = vrot.lane.b32.xlu0 %v19, 1
  %v105 = vpop.permute.xlu0 %104
  %107 = vrot.lane.b32.xlu0 %v14, 1
  %v108 = vpop.permute.xlu0 %107
  %109 = vrot.lane.b32.xlu0 %v15, 1
  %v110 = vpop.permute.xlu0 %109
  %111 = vrot.lane.b32.xlu0 %v16, 1
  %v112 = vpop.permute.xlu0 %111
  %113 = vrot.lane.b32.xlu0 %v17, 1
  %v114 = vpop.permute.xlu0 %113
  %115 = vrot.lane.b32.xlu0 %v18, 1
  %v116 = vpop.permute.xlu0 %115
  %vm117 = vcmask 7168
  %v118 = vsel %vm117, %v108, %v110
  %v119 = vsel %vm117, %v110, %v112
  %v120 = vsel %vm117, %v112, %v114
  %v121 = vsel %vm117, %v114, %v116
  %v122 = vsel %vm117, %v116, %v105
  %v129 = vsel %vm117, %v105, %v108
  %130 = vrot.lane.b32.xlu0 %v14, 127
  %v131 = vpop.permute.xlu0 %130
  %132 = vrot.lane.b32.xlu0 %v15, 127
  %v133 = vpop.permute.xlu0 %132
  %134 = vrot.lane.b32.xlu0 %v16, 127
  %v135 = vpop.permute.xlu0 %134
  %136 = vrot.lane.b32.xlu0 %v17, 127
  %v137 = vpop.permute.xlu0 %136
  %138 = vrot.lane.b32.xlu0 %v18, 127
  %v139 = vpop.permute.xlu0 %138
  %140 = vrot.lane.b32.xlu0 %v19, 127
  %v141 = vpop.permute.xlu0 %140
  %vm142 = vcmask 1039360
  %v143 = vsel %vm142, %v131, %v133
  %v144 = vsel %vm142, %v133, %v135
  %v145 = vsel %vm142, %v135, %v137
  %v146 = vsel %vm142, %v137, %v139
  %v147 = vsel %vm142, %v139, %v141
  %v155 = vsel %vm142, %v141, %v131
  %156 = vrot.lane.b32.xlu0 %v14, 111
  %v157 = vpop.permute.xlu0 %156
  %158 = vrot.lane.b32.xlu0 %v15, 111
  %v159 = vpop.permute.xlu0 %158
  %160 = vrot.lane.b32.xlu0 %v16, 111
  %v161 = vpop.permute.xlu0 %160
  %162 = vrot.lane.b32.xlu0 %v17, 111
  %v163 = vpop.permute.xlu0 %162
  %164 = vrot.lane.b32.xlu0 %v18, 111
  %v165 = vpop.permute.xlu0 %164
  %166 = vrot.lane.b32.xlu0 %v19, 111
  %v167 = vpop.permute.xlu0 %166
  %vm168 = vcmask 908288
  %v169 = vsel %vm168, %v157, %v159
  %v170 = vsel %vm168, %v159, %v161
  %v171 = vsel %vm168, %v161, %v163
  %v172 = vsel %vm168, %v163, %v165
  %v173 = vsel %vm168, %v165, %v167
  %v181 = vsel %vm168, %v167, %v157
  %182 = vrot.lane.b32.xlu0 %v14, 110
  %v183 = vpop.permute.xlu0 %182
  %184 = vrot.lane.b32.xlu0 %v15, 110
  %v185 = vpop.permute.xlu0 %184
  %186 = vrot.lane.b32.xlu0 %v16, 110
  %v187 = vpop.permute.xlu0 %186
  %188 = vrot.lane.b32.xlu0 %v17, 110
  %v189 = vpop.permute.xlu0 %188
  %190 = vrot.lane.b32.xlu0 %v18, 110
  %v191 = vpop.permute.xlu0 %190
  %192 = vrot.lane.b32.xlu0 %v19, 110
  %v193 = vpop.permute.xlu0 %192
  %vm194 = vcmask 900096
  %v195 = vsel %vm194, %v183, %v185
  %v196 = vsel %vm194, %v185, %v187
  %v197 = vsel %vm194, %v187, %v189
  %v198 = vsel %vm194, %v189, %v191
  %v199 = vsel %vm194, %v191, %v193
  %v207 = vsel %vm194, %v193, %v183
  %208 = vrot.lane.b32.xlu0 %v14, 109
  %v209 = vpop.permute.xlu0 %208
  %210 = vrot.lane.b32.xlu0 %v15, 109
  %v211 = vpop.permute.xlu0 %210
  %212 = vrot.lane.b32.xlu0 %v16, 109
  %v213 = vpop.permute.xlu0 %212
  %214 = vrot.lane.b32.xlu0 %v17, 109
  %v215 = vpop.permute.xlu0 %214
  %216 = vrot.lane.b32.xlu0 %v18, 109
  %v217 = vpop.permute.xlu0 %216
  %218 = vrot.lane.b32.xlu0 %v19, 109
  %v219 = vpop.permute.xlu0 %218
  %vm220 = vcmask 891904
  %v221 = vsel %vm220, %v209, %v211
  %v222 = vsel %vm220, %v211, %v213
  %v223 = vsel %vm220, %v213, %v215
  %v224 = vsel %vm220, %v215, %v217
  %v225 = vsel %vm220, %v217, %v219
  %v233 = vsel %vm220, %v219, %v209
  %v234 = vld [vmem:[%s1] sm:$0xff]
  %v235 = vld [vmem:[%s1 + $0x8] sm:$0xff]
  %v236 = vld [vmem:[%s1 + $0x10] sm:$0xff]
  %v237 = vld [vmem:[%s1 + $0x18] sm:$0xff]
  %v238 = vld [vmem:[%s2] sm:$0xff]
  %v239 = vld [vmem:[%s2 + $0x8] sm:$0xff]
  %v240 = vld [vmem:[%s2 + $0x10] sm:$0xff]
  %v241 = vld [vmem:[%s2 + $0x18] sm:$0xff]
  %243 = vset.pattern.permute.xlu0 0
  %244 = vperm.xlu0 %243, %v238
  %v245 = vpop.permute.xlu0 %244
  %248 = vset.pattern.permute.xlu0 0
  %249 = vperm.xlu0 %248, %v239
  %v250 = vpop.permute.xlu0 %249
  %253 = vset.pattern.permute.xlu0 0
  %254 = vperm.xlu0 %253, %v240
  %v255 = vpop.permute.xlu0 %254
  %258 = vset.pattern.permute.xlu0 0
  %259 = vperm.xlu0 %258, %v241
  %v260 = vpop.permute.xlu0 %259
  %vm262 = vcmask 588800
  %v264 = vsel %vm262, %v234, 0
  %v267 = vsel %vm262, %v235, 0
  %v270 = vsel %vm262, %v236, 0
  %v273 = vsel %vm262, %v237, 0
  %275 = vmatprep.subr.mxu0 %v40
  %276 = vmatpush1.msra.mxu0 %v51
  %277 = vmatprep.subr.mxu0 %v66
  %278 = vmatpush1.msra.mxu0 %v77
  %279 = vmatprep.subr.mxu0 %v92
  %280 = vmatpush1.msra.mxu0 %v103
  %281 = vmatprep.subr.mxu0 %v118
  %282 = vmatpush1.msra.mxu0 %v129
  %283 = vmatprep.subr.mxu0 %v15
  %284 = vmatpush1.msra.mxu0 %v14
  %285 = vmatprep.subr.mxu0 %v144
  %286 = vmatpush1.msra.mxu0 %v143
  %287 = vmatprep.subr.mxu0 %v170
  %288 = vmatpush1.msra.mxu0 %v169
  %289 = vmatprep.subr.mxu0 %v196
  %290 = vmatpush1.msra.mxu0 %v195
  %291 = vmatprep.subr.mxu0 %v222
  %292 = vmatpush1.msra.mxu0 %v221
  %293 = vmatprep.subr.mxu0 0.0
  %294 = vmatpush1.msra.mxu0 0.0
  %295 = vmatprep.subr.mxu0 0.0
  %296 = vmatpush1.msra.mxu0 0.0
  %297 = vmatprep.subr.mxu0 0.0
  %298 = vmatpush1.msra.mxu0 0.0
  %299 = vmatprep.subr.mxu0 0.0
  %300 = vmatpush1.msra.mxu0 0.0
  %301 = vmatprep.subr.mxu0 0.0
  %302 = vmatpush1.msra.mxu0 0.0
  %303 = vmatprep.subr.mxu0 0.0
  %304 = vmatpush1.msra.mxu0 0.0
  %305 = vmatprep.subr.mxu0 0.0
  %306 = vmatpush1.msra.mxu0 0.0
  %307 = vmatprep.subr.mxu0 0.0
  %308 = vmatpush1.msra.mxu0 0.0
  %309 = vmatprep.subr.mxu0 0.0
  %310 = vmatpush1.msra.mxu0 0.0
  %311 = vmatprep.subr.mxu0 0.0
  %312 = vmatpush1.msra.mxu0 0.0
  %313 = vmatprep.subr.mxu0 0.0
  %314 = vmatpush1.msra.mxu0 0.0
  %315 = vmatprep.subr.mxu0 0.0
  %316 = vmatpush1.msra.mxu0 0.0
  %317 = vmatprep.subr.mxu0 0.0
  %318 = vmatpush1.msra.mxu0 0.0
  %319 = vmatprep.subr.mxu0 0.0
  %320 = vmatpush1.msra.mxu0 0.0
  %321 = vmatprep.subr.mxu0 0.0
  %322 = vmatpush1.msra.mxu0 0.0
  %323 = vmatprep.subr.mxu0 0.0
  %324 = vmatpush1.msra.mxu0 0.0
  %325 = vmatprep.subr.mxu0 0.0
  %326 = vmatpush1.msra.mxu0 0.0
  %327 = vmatprep.subr.mxu0 0.0
  %328 = vmatpush1.msra.mxu0 0.0
  %329 = vmatprep.subr.mxu0 0.0
  %330 = vmatpush1.msra.mxu0 0.0
  %331 = vmatprep.subr.mxu0 0.0
  %332 = vmatpush1.msra.mxu0 0.0
  %333 = vmatprep.subr.mxu0 0.0
  %334 = vmatpush1.msra.mxu0 0.0
  %335 = vmatprep.subr.mxu0 0.0
  %336 = vmatpush1.msra.mxu0 0.0
  %337 = vmatprep.subr.mxu0 0.0
  %338 = vmatpush1.msra.mxu0 0.0
  %339 = vmatprep.mubr.f32.mxu0 0.0
  %340 = vmatmul.mubr.f32.gmra.mrb[0].mxu0 %v264
  %v341 = vpop.f32.mrb[0].mxu0
  %v342 = vadd.f32 %v245, %v341
  %v343 = vpop.f32.mrb[0].mxu0
  %v344 = vadd.f32 %v245, %v343
  %345 = vmatprep.mubr.f32.mxu0 0.0
  %346 = vmatmul.mubr.f32.gmra.mrb[0].mxu0 %v267
  %v347 = vpop.f32.mrb[0].mxu0
  %v348 = vadd.f32 %v250, %v347
  %v349 = vpop.f32.mrb[0].mxu0
  %v350 = vadd.f32 %v250, %v349
  %351 = vmatprep.mubr.f32.mxu0 0.0
  %352 = vmatmul.mubr.f32.gmra.mrb[0].mxu0 %v270
  %v353 = vpop.f32.mrb[0].mxu0
  %v354 = vadd.f32 %v255, %v353
  %v355 = vpop.f32.mrb[0].mxu0
  %v356 = vadd.f32 %v255, %v355
  %357 = vmatprep.mubr.f32.mxu0 0.0
  %358 = vmatmul.mubr.f32.gmra.mrb[0].mxu0 %v273
  %v359 = vpop.f32.mrb[0].mxu0
  %v360 = vadd.f32 %v260, %v359
  %v361 = vpop.f32.mrb[0].mxu0
  %v362 = vadd.f32 %v260, %v361
  %363 = vdwg.mxu0
  %364 = vmatprep.subr.mxu0 %v42
  %365 = vmatpush1.msra.mxu0 %v41
  %366 = vmatprep.subr.mxu0 %v68
  %367 = vmatpush1.msra.mxu0 %v67
  %368 = vmatprep.subr.mxu0 %v94
  %369 = vmatpush1.msra.mxu0 %v93
  %370 = vmatprep.subr.mxu0 %v120
  %371 = vmatpush1.msra.mxu0 %v119
  %372 = vmatprep.subr.mxu0 %v17
  %373 = vmatpush1.msra.mxu0 %v16
  %374 = vmatprep.subr.mxu0 %v146
  %375 = vmatpush1.msra.mxu0 %v145
  %376 = vmatprep.subr.mxu0 %v172
  %377 = vmatpush1.msra.mxu0 %v171
  %378 = vmatprep.subr.mxu0 %v198
  %379 = vmatpush1.msra.mxu0 %v197
  %380 = vmatprep.subr.mxu0 %v224
  %381 = vmatpush1.msra.mxu0 %v223
  %382 = vmatprep.subr.mxu0 0.0
  %383 = vmatpush1.msra.mxu0 0.0
  %384 = vmatprep.subr.mxu0 0.0
  %385 = vmatpush1.msra.mxu0 0.0
  %386 = vmatprep.subr.mxu0 0.0
  %387 = vmatpush1.msra.mxu0 0.0
  %388 = vmatprep.subr.mxu0 0.0
  %389 = vmatpush1.msra.mxu0 0.0
  %390 = vmatprep.subr.mxu0 0.0
  %391 = vmatpush1.msra.mxu0 0.0
  %392 = vmatprep.subr.mxu0 0.0
  %393 = vmatpush1.msra.mxu0 0.0
  %394 = vmatprep.subr.mxu0 0.0
  %395 = vmatpush1.msra.mxu0 0.0
  %396 = vmatprep.subr.mxu0 0.0
  %397 = vmatpush1.msra.mxu0 0.0
  %398 = vmatprep.subr.mxu0 0.0
  %399 = vmatpush1.msra.mxu0 0.0
  %400 = vmatprep.subr.mxu0 0.0
  %401 = vmatpush1.msra.mxu0 0.0
  %402 = vmatprep.subr.mxu0 0.0
  %403 = vmatpush1.msra.mxu0 0.0
  %404 = vmatprep.subr.mxu0 0.0
  %405 = vmatpush1.msra.mxu0 0.0
  %406 = vmatprep.subr.mxu0 0.0
  %407 = vmatpush1.msra.mxu0 0.0
  %408 = vmatprep.subr.mxu0 0.0
  %409 = vmatpush1.msra.mxu0 0.0
  %410 = vmatprep.subr.mxu0 0.0
  %411 = vmatpush1.msra.mxu0 0.0
  %412 = vmatprep.subr.mxu0 0.0
  %413 = vmatpush1.msra.mxu0 0.0
  %414 = vmatprep.subr.mxu0 0.0
  %415 = vmatpush1.msra.mxu0 0.0
  %416 = vmatprep.subr.mxu0 0.0
  %417 = vmatpush1.msra.mxu0 0.0
  %418 = vmatprep.subr.mxu0 0.0
  %419 = vmatpush1.msra.mxu0 0.0
  %420 = vmatprep.subr.mxu0 0.0
  %421 = vmatpush1.msra.mxu0 0.0
  %422 = vmatprep.subr.mxu0 0.0
  %423 = vmatpush1.msra.mxu0 0.0
  %424 = vmatprep.subr.mxu0 0.0
  %425 = vmatpush1.msra.mxu0 0.0
  %426 = vmatprep.subr.mxu0 0.0
  %427 = vmatpush1.msra.mxu0 0.0
  %428 = vmatprep.mubr.f32.mxu0 0.0
  %429 = vmatmul.mubr.f32.gmra.mrb[0].mxu0 %v264
  %v430 = vpop.f32.mrb[0].mxu0
  %v431 = vadd.f32 %v245, %v430
  %v432 = vpop.f32.mrb[0].mxu0
  %v433 = vadd.f32 %v245, %v432
  %434 = vmatprep.mubr.f32.mxu0 0.0
  %435 = vmatmul.mubr.f32.gmra.mrb[0].mxu0 %v267
  %v436 = vpop.f32.mrb[0].mxu0
  %v437 = vadd.f32 %v250, %v436
  %v438 = vpop.f32.mrb[0].mxu0
  %v439 = vadd.f32 %v250, %v438
  %440 = vmatprep.mubr.f32.mxu0 0.0
  %441 = vmatmul.mubr.f32.gmra.mrb[0].mxu0 %v270
  %v442 = vpop.f32.mrb[0].mxu0
  %v443 = vadd.f32 %v255, %v442
  %v444 = vpop.f32.mrb[0].mxu0
  %v445 = vadd.f32 %v255, %v444
  %446 = vmatprep.mubr.f32.mxu0 0.0
  %447 = vmatmul.mubr.f32.gmra.mrb[0].mxu0 %v273
  %v448 = vpop.f32.mrb[0].mxu0
  %v449 = vadd.f32 %v260, %v448
  %v450 = vpop.f32.mrb[0].mxu0
  %v451 = vadd.f32 %v260, %v450
  %452 = vdwg.mxu0
  %453 = vmatprep.subr.mxu0 %v44
  %454 = vmatpush1.msra.mxu0 %v43
  %455 = vmatprep.subr.mxu0 %v70
  %456 = vmatpush1.msra.mxu0 %v69
  %457 = vmatprep.subr.mxu0 %v96
  %458 = vmatpush1.msra.mxu0 %v95
  %459 = vmatprep.subr.mxu0 %v122
  %460 = vmatpush1.msra.mxu0 %v121
  %461 = vmatprep.subr.mxu0 %v19
  %462 = vmatpush1.msra.mxu0 %v18
  %463 = vmatprep.subr.mxu0 %v155
  %464 = vmatpush1.msra.mxu0 %v147
  %465 = vmatprep.subr.mxu0 %v181
  %466 = vmatpush1.msra.mxu0 %v173
  %467 = vmatprep.subr.mxu0 %v207
  %468 = vmatpush1.msra.mxu0 %v199
  %469 = vmatprep.subr.mxu0 %v233
  %470 = vmatpush1.msra.mxu0 %v225
  %471 = vmatprep.subr.mxu0 0.0
  %472 = vmatpush1.msra.mxu0 0.0
  %473 = vmatprep.subr.mxu0 0.0
  %474 = vmatpush1.msra.mxu0 0.0
  %475 = vmatprep.subr.mxu0 0.0
  %476 = vmatpush1.msra.mxu0 0.0
  %477 = vmatprep.subr.mxu0 0.0
  %478 = vmatpush1.msra.mxu0 0.0
  %479 = vmatprep.subr.mxu0 0.0
  %480 = vmatpush1.msra.mxu0 0.0
  %481 = vmatprep.subr.mxu0 0.0
  %482 = vmatpush1.msra.mxu0 0.0
  %483 = vmatprep.subr.mxu0 0.0
  %484 = vmatpush1.msra.mxu0 0.0
  %485 = vmatprep.subr.mxu0 0.0
  %486 = vmatpush1.msra.mxu0 0.0
  %487 = vmatprep.subr.mxu0 0.0
  %488 = vmatpush1.msra.mxu0 0.0
  %489 = vmatprep.subr.mxu0 0.0
  %490 = vmatpush1.msra.mxu0 0.0
  %491 = vmatprep.subr.mxu0 0.0
  %492 = vmatpush1.msra.mxu0 0.0
  %493 = vmatprep.subr.mxu0 0.0
  %494 = vmatpush1.msra.mxu0 0.0
  %495 = vmatprep.subr.mxu0 0.0
  %496 = vmatpush1.msra.mxu0 0.0
  %497 = vmatprep.subr.mxu0 0.0
  %498 = vmatpush1.msra.mxu0 0.0
  %499 = vmatprep.subr.mxu0 0.0
  %500 = vmatpush1.msra.mxu0 0.0
  %501 = vmatprep.subr.mxu0 0.0
  %502 = vmatpush1.msra.mxu0 0.0
  %503 = vmatprep.subr.mxu0 0.0
  %504 = vmatpush1.msra.mxu0 0.0
  %505 = vmatprep.subr.mxu0 0.0
  %506 = vmatpush1.msra.mxu0 0.0
  %507 = vmatprep.subr.mxu0 0.0
  %508 = vmatpush1.msra.mxu0 0.0
  %509 = vmatprep.subr.mxu0 0.0
  %510 = vmatpush1.msra.mxu0 0.0
  %511 = vmatprep.subr.mxu0 0.0
  %512 = vmatpush1.msra.mxu0 0.0
  %513 = vmatprep.subr.mxu0 0.0
  %514 = vmatpush1.msra.mxu0 0.0
  %515 = vmatprep.subr.mxu0 0.0
  %516 = vmatpush1.msra.mxu0 0.0
  %517 = vmatprep.mubr.f32.mxu0 0.0
  %518 = vmatmul.mubr.f32.gmra.mrb[0].mxu0 %v264
  %v519 = vpop.f32.mrb[0].mxu0
  %v520 = vadd.f32 %v245, %v519
  %v521 = vpop.f32.mrb[0].mxu0
  %v522 = vadd.f32 %v245, %v521
  %523 = vmatprep.mubr.f32.mxu0 0.0
  %524 = vmatmul.mubr.f32.gmra.mrb[0].mxu0 %v267
  %v525 = vpop.f32.mrb[0].mxu0
  %v526 = vadd.f32 %v250, %v525
  %v527 = vpop.f32.mrb[0].mxu0
  %v528 = vadd.f32 %v250, %v527
  %529 = vmatprep.mubr.f32.mxu0 0.0
  %530 = vmatmul.mubr.f32.gmra.mrb[0].mxu0 %v270
  %v531 = vpop.f32.mrb[0].mxu0
  %v532 = vadd.f32 %v255, %v531
  %v533 = vpop.f32.mrb[0].mxu0
  %v534 = vadd.f32 %v255, %v533
  %535 = vmatprep.mubr.f32.mxu0 0.0
  %536 = vmatmul.mubr.f32.gmra.mrb[0].mxu0 %v273
  %v537 = vpop.f32.mrb[0].mxu0
  %v538 = vadd.f32 %v260, %v537
  %v539 = vpop.f32.mrb[0].mxu0
  %v540 = vadd.f32 %v260, %v539
  %541 = vdwg.mxu0
  %v542 = vmax.f32 %v342, 0.0
  %v543 = vmax.f32 %v344, 0.0
  %v544 = vmax.f32 %v431, 0.0
  %v545 = vmax.f32 %v433, 0.0
  %v546 = vmax.f32 %v520, 0.0
  %v547 = vmax.f32 %v522, 0.0
  %v548 = vmax.f32 %v348, 0.0
  %v549 = vmax.f32 %v350, 0.0
  %v550 = vmax.f32 %v437, 0.0
  %v551 = vmax.f32 %v439, 0.0
  %v552 = vmax.f32 %v526, 0.0
  %v553 = vmax.f32 %v528, 0.0
  %v554 = vmax.f32 %v354, 0.0
  %v555 = vmax.f32 %v356, 0.0
  %v556 = vmax.f32 %v443, 0.0
  %v557 = vmax.f32 %v445, 0.0
  %v558 = vmax.f32 %v532, 0.0
  %v559 = vmax.f32 %v534, 0.0
  %v560 = vmax.f32 %v360, 0.0
  %v561 = vmax.f32 %v362, 0.0
  %v562 = vmax.f32 %v449, 0.0
  %v563 = vmax.f32 %v451, 0.0
  %v564 = vmax.f32 %v538, 0.0
  %v565 = vmax.f32 %v540, 0.0
  %566 = vst [vmem:[%s3] sm:$0xff] %v542
  %567 = vst [vmem:[%s3 + $0x8] sm:$0xff] %v543
  %568 = vst [vmem:[%s3 + $0x10] sm:$0xff] %v544
  %569 = vst [vmem:[%s3 + $0x18] sm:$0xff] %v545
  %570 = vst [vmem:[%s3 + $0x20] sm:$0xff] %v546
  %571 = vst [vmem:[%s3 + $0x28] sm:$0xff] %v547
  %572 = vst [vmem:[%s3 + $0x30] sm:$0xff] %v548
  %573 = vst [vmem:[%s3 + $0x38] sm:$0xff] %v549
  %574 = vst [vmem:[%s3 + $0x40] sm:$0xff] %v550
  %575 = vst [vmem:[%s3 + $0x48] sm:$0xff] %v551
  %576 = vst [vmem:[%s3 + $0x50] sm:$0xff] %v552
  %577 = vst [vmem:[%s3 + $0x58] sm:$0xff] %v553
  %578 = vst [vmem:[%s3 + $0x60] sm:$0xff] %v554
  %579 = vst [vmem:[%s3 + $0x68] sm:$0xff] %v555
  %580 = vst [vmem:[%s3 + $0x70] sm:$0xff] %v556
  %581 = vst [vmem:[%s3 + $0x78] sm:$0xff] %v557
  %582 = vst [vmem:[%s3 + $0x80] sm:$0xff] %v558
  %583 = vst [vmem:[%s3 + $0x88] sm:$0xff] %v559
  %584 = vst [vmem:[%s3 + $0x90] sm:$0xff] %v560
  %585 = vst [vmem:[%s3 + $0x98] sm:$0xff] %v561
  %586 = vst [vmem:[%s3 + $0xa0] sm:$0xff] %v562
  %587 = vst [vmem:[%s3 + $0xa8] sm:$0xff] %v563
  %588 = vst [vmem:[%s3 + $0xb0] sm:$0xff] %v564
  %589 = vst [vmem:[%s3 + $0xb8] sm:$0xff] %v565
  // Predicated region
  $region14: #{up_conv.1} parent=0 // pred_check
    _
  $region15: #{up_conv.1} parent=0 // pred_check_branch
    %591 = sbr.rel (0) target = $region17
  $region16: #{up_conv.1} parent=0 // pred_region
    _
  $region17: #{up_conv.1} parent=0 // pred_fallthru
    _
  // Predicated region
  $region18: #{up_conv.1} parent=0 // pred_check
    _
  $region19: #{up_conv.1} parent=0 // pred_check_branch
    %593 = sbr.rel (0) target = $region21
  $region20: #{up_conv.1} parent=0 // pred_region
    _
  $region21: #{up_conv.1} parent=0 // pred_fallthru
    _

</llo_original>
